<compile_context>
chip_gen: v6e
topology: v6e:2x2x1
jax: 0.10.0
libtpu: 0.0.40
codegen_flags: <defaults>
</compile_context>

<pallas_src>
import jax
import jax.numpy as jnp
from jax.experimental import pallas as pl
from jax.experimental.pallas import tpu as pltpu

_LANES = 128
_SUBLANES = 8


def _sigmoid_kernel(x_ref, o_ref):
    x = x_ref[...].astype(jnp.float32)
    # Stable sigmoid: exp(-|x|) never overflows; pick the correct branch.
    #   x >= 0:  1 / (1 + e)
    #   x <  0:  e / (1 + e)
    e = jnp.exp(-jnp.abs(x))                 # EUP slot
    r = pl.reciprocal(1.0 + e)               # full-precision reciprocal
    y = jnp.where(x >= 0, r, e * r)
    o_ref[...] = y.astype(o_ref.dtype)


def sigmoid_stable(x: jax.Array, *, tile_rows: int = 2048) -> jax.Array:
    """Applies 1/(1+exp(-x)) elementwise via a Pallas TPU kernel.

    Accepts any shape / float dtype; returns same shape / dtype as input.
    """
    orig_shape = x.shape
    orig_dtype = x.dtype

    n = x.size
    flat = x.reshape(-1)

    # Fast path (common NN case): no padding copy needed.
    padded = n % _LANES != 0
    if padded:
        pad = _LANES - (n % _LANES)
        flat = jnp.pad(flat, (0, pad))
    rows = flat.shape[0] // _LANES
    x2d = flat.reshape(rows, _LANES)

    # Block: multiple of (8, 128); large for big inputs, trimmed for tiny ones.
    tr = min(tile_rows, max(_SUBLANES, ((rows + _SUBLANES - 1) // _SUBLANES) * _SUBLANES))
    grid = (pl.cdiv(rows, tr),)  # ragged last block handled by Pallas

    out2d = pl.pallas_call(
        _sigmoid_kernel,
        out_shape=jax.ShapeDtypeStruct((rows, _LANES), orig_dtype),
        grid_spec=pltpu.PrefetchScalarGridSpec(
            num_scalar_prefetch=0,
            grid=grid,
            in_specs=[pl.BlockSpec((tr, _LANES), lambda i: (i, 0))],
            out_specs=pl.BlockSpec((tr, _LANES), lambda i: (i, 0)),
        ),
        compiler_params=pltpu.CompilerParams(
            dimension_semantics=("parallel",),
        ),
    )(x2d)

    if padded:
        return out2d.reshape(-1)[:n].reshape(orig_shape)
    return out2d.reshape(orig_shape)


if __name__ == "__main__":
    key = jax.random.PRNGKey(0)

    # Small NCHW input consistent with typical module usage (fast, no-copy path).
    x = jax.random.normal(key, (2, 4, 16, 16), dtype=jnp.float32) * 5.0
    y = jax.block_until_ready(sigmoid_stable(x))
    ref = 1.0 / (1.0 + jnp.exp(-x))
    assert y.shape == x.shape and y.dtype == x.dtype
    assert jnp.allclose(y, ref, atol=1e-6, rtol=1e-6)

    # Also exercise the ragged (non multiple-of-128) path on a tiny input.
    x2 = jax.random.normal(jax.random.PRNGKey(1), (3, 5, 7, 11), dtype=jnp.float32) * 5.0
    y2 = jax.block_until_ready(sigmoid_stable(x2))
    ref2 = 1.0 / (1.0 + jnp.exp(-x2))
    assert y2.shape == x2.shape and y2.dtype == x2.dtype
    assert jnp.allclose(y2, ref2, atol=1e-6, rtol=1e-6)

    print("KERNEL_OK")
</pallas_src>

<mosaic_0001>
module attributes {stable_mosaic.version = 11 : i64} {
  func.func @_sigmoid_kernel(%arg0: i32, %arg1: memref<16x128xf32, #tpu.memory_space<vmem>>, %arg2: memref<16x128xf32, #tpu.memory_space<vmem>>) attributes {dimension_semantics = [#tpu.dimension_semantics<parallel>], iteration_bounds = array<i64: 1>, scalar_prefetch = 0 : i64, scratch_operands = 0 : i64, tpu.core_type = #tpu.core_type<tc>, window_params = [{transform_indices = @transform_0, window_bounds = array<i64: 16, 128>}, {transform_indices = @transform_1, window_bounds = array<i64: 16, 128>}]} {
    %c0 = arith.constant 0 : index
    %c0_0 = arith.constant 0 : index
    %0 = vector.load %arg1[%c0, %c0_0] : memref<16x128xf32, #tpu.memory_space<vmem>>, vector<16x128xf32>
    %1 = math.absf %0 : vector<16x128xf32>
    %cst = arith.constant 0.000000e+00 : f32
    %2 = vector.broadcast %cst : f32 to vector<16x128xf32>
    %3 = arith.subf %2, %1 : vector<16x128xf32>
    %4 = math.exp %3 : vector<16x128xf32>
    %cst_1 = arith.constant 1.000000e+00 : f32
    %5 = vector.broadcast %cst_1 : f32 to vector<16x128xf32>
    %6 = arith.addf %5, %4 : vector<16x128xf32>
    %7 = tpu.reciprocal %6 : vector<16x128xf32> -> vector<16x128xf32>
    %cst_2 = arith.constant 0.000000e+00 : f32
    %8 = vector.broadcast %cst_2 : f32 to vector<16x128xf32>
    %9 = arith.cmpf oge, %0, %8 : vector<16x128xf32>
    %10 = arith.mulf %4, %7 : vector<16x128xf32>
    %11 = arith.select %9, %7, %10 : vector<16x128xi1>, vector<16x128xf32>
    %c0_3 = arith.constant 0 : index
    %c0_4 = arith.constant 0 : index
    %12 = vector.load %arg2[%c0_3, %c0_4] : memref<16x128xf32, #tpu.memory_space<vmem>>, vector<16x128xf32>
    tpu.vector_store %arg2[%c0_3, %c0_4], %11 {strides = array<i32>} : memref<16x128xf32, #tpu.memory_space<vmem>>, vector<16x128xf32>,
    return
  }
  func.func @transform_0(%arg0: i32) -> (i32, i32) {
    %c0_i32 = arith.constant 0 : i32
    %c0_i32_0 = arith.constant 0 : i32
    return %arg0, %c0_i32 : i32, i32
  }
  func.func @transform_1(%arg0: i32) -> (i32, i32) {
    %c0_i32 = arith.constant 0 : i32
    %c0_i32_0 = arith.constant 0 : i32
    return %arg0, %c0_i32 : i32, i32
  }
}

</mosaic_0001>

<llo_original>
// kernel: tpu_custom_call.1
$region0: #{tpu_custom_call.1}
  #allocation0 [shape = 'u32[]', space=smem, size = 0x4, offset = 0x4, fixed_abs, tag = 'smem constant byte address 0x4 - core index']
  #allocation1 [shape = 'u32[144,128]{1,0:T(1,128)}', space=vmem, size = 0x12000, scoped, tag = 'internal scratch']
  %s0 = inlined_call_operand.hbm [shape: f32[16,128], index: 0, kind: input, shape index: {}]
  %s1 = inlined_call_operand.hbm [shape: f32[16,128], index: 1, kind: output, shape index: {}]
  %s2 = sld [smem:[#allocation0]]
  $region18: #{tpu_custom_call.1} parent=0
    _
  %s4 = ssub.s32 1, %s2
  %s5 = scalar_select 0, %s4, %s2
  $region1: #{tpu_custom_call.1} parent=0
    #allocation2 [shape = 'u8[8192]{0}', space=vmem, size = 0x2000, scoped, tag = 'input window, operand 0, single buffered']
    #allocation3 [shape = 's32[1]{0}', space=sflag, size = 0x4, scoped, tag = 'scoped memory for tpu_custom_call.1']
    #allocation4 [shape = 's32[1]{0}', space=sflag, size = 0x4, scoped, tag = 'scoped memory for tpu_custom_call.1']
    #allocation5 [shape = 'u8[8192]{0}', space=vmem, size = 0x2000, scoped, tag = 'output window, operand 0, single buffered']
    %6 = vsyncpa [#allocation3], 0
    %7 = vsyncpa [#allocation4], 0
    // Predicated region
    $region2: #{tpu_custom_call.1} parent=1 // pred_check
      _
    $region3: #{tpu_custom_call.1} parent=1 // pred_check_branch
      %9 = sbr.rel (0) target = $region5
    $region4: #{tpu_custom_call.1} parent=1 // pred_region
      %s11 = ssub.s32 256, 256
      %12 = vsyncadd [#allocation3], %s11
      %s13 = sshll.u32 [#allocation2], 4
      %s14 = int_to_ptr.vmem [resolvable:$true] %s13
      %19 = dma.hbm_to_vmem [thread:$0]  %s0, 256, %s14, [#allocation3], 128, 128, 8
    $region5: #{tpu_custom_call.1} parent=1 // pred_fallthru
      _
    // Predicated region
    $region6: #{tpu_custom_call.1} parent=1 // pred_check
      _
    $region7: #{tpu_custom_call.1} parent=1 // pred_check_branch
      %21 = sbr.rel (0) target = $region9
    $region8: #{tpu_custom_call.1} parent=1 // pred_region
      %22 = dma.done [#allocation3], 256
    $region9: #{tpu_custom_call.1} parent=1 // pred_fallthru
      _
    %v23 = vld [vmem:[#allocation2] sm:$0xff]
    %v24 = vld [vmem:[#allocation2 + $0x8] sm:$0xff]
    %v25 = vand.u32 2147483647, %v23
    %v26 = vand.u32 2147483647, %v24
    %v27 = vsub.f32 0.0, %v25
    %v28 = vsub.f32 0.0, %v26
    %v29 = vmul.f32 %v27, 1.442695
    %v30 = vpow.pop %v29
    %v31 = vmul.f32 %v28, 1.442695
    %v32 = vpow.pop %v31
    %v33 = vadd.f32 %v30, 1.0
    %v34 = vadd.f32 %v32, 1.0
    %v35 = vrcp.pop %v33
    %v36 = vrcp.pop %v34
    %vm37 = vcmp.ge.f32.partialorder %v23, 0.0
    %vm38 = vcmp.ge.f32.partialorder %v24, 0.0
    %v39 = vmul.f32 %v30, %v35
    %v40 = vmul.f32 %v32, %v36
    %v41 = vsel %vm37, %v35, %v39
    %v42 = vsel %vm38, %v36, %v40
    %43 = vst [vmem:[#allocation5] sm:$0xff] %v41
    %44 = vst [vmem:[#allocation5 + $0x8] sm:$0xff] %v42
    // Predicated region
    $region10: #{tpu_custom_call.1} parent=1 // pred_check
      _
    $region11: #{tpu_custom_call.1} parent=1 // pred_check_branch
      %46 = sbr.rel (0) target = $region13
    $region12: #{tpu_custom_call.1} parent=1 // pred_region
      %s48 = ssub.s32 256, 256
      %49 = vsyncadd [#allocation4], %s48
      %s50 = sshll.u32 [#allocation5], 4
      %s51 = int_to_ptr.vmem [resolvable:$true] %s50
      %56 = dma.vmem_to_hbm [thread:$0]  %s51, 256, %s1, [#allocation4], 128, 128, 8
    $region13: #{tpu_custom_call.1} parent=1 // pred_fallthru
      _
    // Predicated region
    $region14: #{tpu_custom_call.1} parent=1 // pred_check
      _
    $region15: #{tpu_custom_call.1} parent=1 // pred_check_branch
      %58 = sbr.rel (0) target = $region17
    $region16: #{tpu_custom_call.1} parent=1 // pred_region
      %59 = dma.done [#allocation4], 256
    $region17: #{tpu_custom_call.1} parent=1 // pred_fallthru
      _
    %60 = vsyncpa [#allocation3], 1
    %61 = vsyncpa [#allocation4], 1

</llo_original>
